<compile_context>
chip_gen: v5e
topology: v5e:2x2
jax: 0.10.0
libtpu: 0.0.40
codegen_flags: <defaults>
</compile_context>

<pallas_src>
import functools

import jax
import jax.numpy as jnp
from jax import lax
from jax.experimental import pallas as pl
from jax.experimental.pallas import tpu as pltpu


_SQRT_2_OVER_PI = 0.7978845608028654
_MIB = 1024 * 1024
# Budget under which we keep both weight matrices resident in VMEM (leaves
# headroom below v7x's 64 MiB physical VMEM, accounting for double-buffering).
_RESIDENT_VMEM_BUDGET = 45 * _MIB


def _gelu_tanh(x):
    # Matches torch.nn.GELU(approximate='tanh')
    return 0.5 * x * (1.0 + jnp.tanh(_SQRT_2_OVER_PI * (x + 0.044715 * x * x * x)))


def _round_up(a, b):
    return ((a + b - 1) // b) * b


def _ffn_resident_kernel(x_ref, w1_ref, w2_ref, o_ref):
    # x_ref:  (tm, C_p)      activations row tile
    # w1_ref: (d_ffn, C_p)   full W_proj, conv (out, in) layout, VMEM-resident
    # w2_ref: (C_p, d_ffn)   full W_onet, conv (out, in) layout, VMEM-resident
    # o_ref:  (tm, C_p)      output row tile
    h = lax.dot_general(
        x_ref[...], w1_ref[...],
        dimension_numbers=(((1,), (1,)), ((), ())),
        preferred_element_type=jnp.float32)
    g = _gelu_tanh(h).astype(x_ref.dtype)
    y = lax.dot_general(
        g, w2_ref[...],
        dimension_numbers=(((1,), (1,)), ((), ())),
        preferred_element_type=jnp.float32)
    o_ref[...] = y.astype(o_ref.dtype)


def _ffn_streamed_kernel(x_ref, w1_ref, w2_ref, o_ref, acc_ref):
    # x_ref:   (tm, C_p)           activations row tile (resident across j)
    # w1_ref:  (tf, C_p)           W_proj chunk, conv (out, in) layout
    # w2_ref:  (C_p, tf)           W_onet chunk, conv (out, in) layout
    # o_ref:   (tm, C_p)           output row tile
    # acc_ref: (tm, C_p) f32       accumulator over the d_ffn grid axis
    j = pl.program_id(1)

    @pl.when(j == 0)
    def _():
        acc_ref[...] = jnp.zeros_like(acc_ref)

    h = lax.dot_general(
        x_ref[...], w1_ref[...],
        dimension_numbers=(((1,), (1,)), ((), ())),
        preferred_element_type=jnp.float32)
    # GELU is elementwise over d_ffn, so summing chunk contributions is exact.
    g = _gelu_tanh(h).astype(x_ref.dtype)

    acc_ref[...] += lax.dot_general(
        g, w2_ref[...],
        dimension_numbers=(((1,), (1,)), ((), ())),
        preferred_element_type=jnp.float32)

    @pl.when(j == pl.num_programs(1) - 1)
    def _():
        o_ref[...] = acc_ref[...].astype(o_ref.dtype)


@functools.partial(jax.jit, static_argnames=("tm", "tf", "force_streamed"))
def positionwise_conv_ff(x, w_proj, w_onet, *, tm=256, tf=512, force_streamed=False):
    """
    x:      (B, T, d_model)
    w_proj: (d_ffn, d_model, 1)   -- torch Conv1d weight layout (out, in, k)
    w_onet: (d_model, d_ffn, 1)
    returns (B, T, d_model)
    """
    B, T, d_model = x.shape
    d_ffn = w_proj.shape[0]
    assert w_proj.shape == (d_ffn, d_model, 1), "only kernel_size=1 supported"
    assert w_onet.shape == (d_model, d_ffn, 1), "only kernel_size=1 supported"

    x_bytes = jnp.dtype(x.dtype).itemsize
    w_bytes = jnp.dtype(w_proj.dtype).itemsize

    M = B * T
    # Lane-dense output: pad d_model to a multiple of 128 only when needed.
    C_p = d_model if d_model % 128 == 0 else _round_up(d_model, 128)

    # --- choose strategy -----------------------------------------------------
    tm_res = max(8, min(tm, _round_up(M, 8)))
    resident_vmem = (
        4 * d_ffn * C_p * w_bytes       # w1 + w2 (double-buffer budget)
        + 4 * tm_res * C_p * x_bytes    # x + out tiles (double buffered)
        + 2 * tm_res * d_ffn * 4)       # f32 hidden / gelu intermediates
    use_resident = (not force_streamed) and (resident_vmem <= _RESIDENT_VMEM_BUDGET)

    if use_resident:
        tm_eff = tm_res
    else:
        # Bigger row tile amortizes the per-row-tile weight re-streaming.
        tm_eff = max(8, min(max(tm, 512), _round_up(M, 8)))
    M_pad = _round_up(M, tm_eff)

    x2d = x.reshape(M, d_model)
    if (M_pad, C_p) != (M, d_model):
        x2d = jnp.pad(x2d, ((0, M_pad - M), (0, C_p - d_model)))

    # Conv1d weights squeezed to 2D, kept in native (out, in) layout: the kernel
    # contracts on the "in" dim directly, so no transpose HBM traffic per call.
    w1 = w_proj[:, :, 0]   # (d_ffn, d_model)
    w2 = w_onet[:, :, 0]   # (d_model, d_ffn)

    # Advisory cost estimate (logical, unpadded sizes).
    cost = pl.CostEstimate(
        flops=4 * M * d_model * d_ffn,
        transcendentals=M * d_ffn,
        bytes_accessed=(2 * M * d_model * x_bytes
                        + 2 * d_model * d_ffn * w_bytes),
    )

    if use_resident:
        if C_p != d_model:
            w1 = jnp.pad(w1, ((0, 0), (0, C_p - d_model)))
            w2 = jnp.pad(w2, ((0, C_p - d_model), (0, 0)))
        vmem_limit = int(min(64 * _MIB, max(32 * _MIB, int(1.25 * resident_vmem))))
        out2d = pl.pallas_call(
            _ffn_resident_kernel,
            out_shape=jax.ShapeDtypeStruct((M_pad, C_p), x.dtype),
            grid_spec=pltpu.PrefetchScalarGridSpec(
                num_scalar_prefetch=0,
                grid=(M_pad // tm_eff,),
                in_specs=[
                    pl.BlockSpec((tm_eff, C_p), lambda i: (i, 0)),
                    pl.BlockSpec((d_ffn, C_p), lambda i: (0, 0)),   # resident
                    pl.BlockSpec((C_p, d_ffn), lambda i: (0, 0)),   # resident
                ],
                out_specs=pl.BlockSpec((tm_eff, C_p), lambda i: (i, 0)),
            ),
            compiler_params=pltpu.CompilerParams(
                dimension_semantics=("parallel",),
                vmem_limit_bytes=vmem_limit),
            cost_estimate=cost,
        )(x2d, w1, w2)
    else:
        # d_ffn chunk must be a multiple of 128 (lane constraint on the w2
        # block) unless it covers the whole d_ffn.
        tf_eff = min(tf, d_ffn)
        if tf_eff < d_ffn:
            tf_eff = max(128, (tf_eff // 128) * 128)
        if tf_eff >= d_ffn:
            tf_eff = d_ffn
        F_pad = _round_up(d_ffn, tf_eff)
        if (F_pad, C_p) != (d_ffn, d_model):
            w1 = jnp.pad(w1, ((0, F_pad - d_ffn), (0, C_p - d_model)))
            w2 = jnp.pad(w2, ((0, C_p - d_model), (0, F_pad - d_ffn)))

        streamed_vmem = (
            4 * tm_eff * C_p * x_bytes        # x + out tiles (double buffered)
            + 4 * tf_eff * C_p * w_bytes      # w1 + w2 chunk tiles
            + tm_eff * C_p * 4                # accumulator scratch
            + 2 * tm_eff * tf_eff * 4)        # h / gelu intermediates
        vmem_limit = int(min(64 * _MIB, max(32 * _MIB, int(1.5 * streamed_vmem))))

        out2d = pl.pallas_call(
            _ffn_streamed_kernel,
            out_shape=jax.ShapeDtypeStruct((M_pad, C_p), x.dtype),
            grid_spec=pltpu.PrefetchScalarGridSpec(
                num_scalar_prefetch=0,
                grid=(M_pad // tm_eff, F_pad // tf_eff),
                in_specs=[
                    pl.BlockSpec((tm_eff, C_p), lambda i, j: (i, 0)),
                    pl.BlockSpec((tf_eff, C_p), lambda i, j: (j, 0)),
                    pl.BlockSpec((C_p, tf_eff), lambda i, j: (0, j)),
                ],
                out_specs=pl.BlockSpec((tm_eff, C_p), lambda i, j: (i, 0)),
                scratch_shapes=[pltpu.VMEM((tm_eff, C_p), jnp.float32)],
            ),
            compiler_params=pltpu.CompilerParams(
                dimension_semantics=("parallel", "arbitrary"),
                vmem_limit_bytes=vmem_limit),
            cost_estimate=cost,
        )(x2d, w1, w2)

    out2d = out2d[:M, :d_model]
    return out2d.reshape(B, T, d_model)


def positionwise_conv_ff_ref(x, w_proj, w_onet):
    """Pure-JAX reference matching the PyTorch module (eval mode)."""
    w1 = jnp.transpose(w_proj[:, :, 0])
    w2 = jnp.transpose(w_onet[:, :, 0])
    h = _gelu_tanh(jnp.einsum("btc,cf->btf", x, w1))
    return jnp.einsum("btf,fc->btc", h, w2)


if __name__ == "__main__":
    # Small shapes consistent with the module: x is (B, T, d_model).
    B, T = 2, 16
    d_model = 32
    d_ffn = 4 * d_model  # 128

    key = jax.random.PRNGKey(0)
    kx, k1, k2 = jax.random.split(key, 3)

    x = jax.random.normal(kx, (B, T, d_model), dtype=jnp.float32)
    # Deterministic synthetic Conv1d weights (out, in, kernel_size=1), bias=False.
    w_proj = jax.random.normal(k1, (d_ffn, d_model, 1), dtype=jnp.float32) * 0.05
    w_onet = jax.random.normal(k2, (d_model, d_ffn, 1), dtype=jnp.float32) * 0.05

    # Primary path: weights resident in VMEM, 1-D row grid.
    ref = positionwise_conv_ff_ref(x, w_proj, w_onet)
    out = jax.block_until_ready(positionwise_conv_ff(x, w_proj, w_onet))
    assert out.shape == (B, T, d_model)
    assert jnp.allclose(out, ref, atol=1e-4, rtol=1e-4), "resident path mismatch"

    # Fallback path: d_ffn streamed as a reduction grid axis (forced here with a
    # small chunk so the accumulator sees multiple steps).
    d_ffn2 = 256
    w_proj2 = jax.random.normal(k1, (d_ffn2, d_model, 1), dtype=jnp.float32) * 0.05
    w_onet2 = jax.random.normal(k2, (d_model, d_ffn2, 1), dtype=jnp.float32) * 0.05
    ref2 = positionwise_conv_ff_ref(x, w_proj2, w_onet2)
    out2 = jax.block_until_ready(
        positionwise_conv_ff(x, w_proj2, w_onet2, tf=128, force_streamed=True))
    assert out2.shape == (B, T, d_model)
    assert jnp.allclose(out2, ref2, atol=1e-4, rtol=1e-4), "streamed path mismatch"

    print("KERNEL_OK")
</pallas_src>

<mosaic_0001>
module attributes {stable_mosaic.version = 11 : i64} {
  func.func @_ffn_resident_kernel(%arg0: i32, %arg1: memref<32x128xf32, #tpu.memory_space<vmem>>, %arg2: memref<128x128xf32, #tpu.memory_space<vmem>>, %arg3: memref<128x128xf32, #tpu.memory_space<vmem>>, %arg4: memref<32x128xf32, #tpu.memory_space<vmem>>) attributes {dimension_semantics = [#tpu.dimension_semantics<parallel>], iteration_bounds = array<i64: 1>, scalar_prefetch = 0 : i64, scratch_operands = 0 : i64, tpu.core_type = #tpu.core_type<tc>, window_params = [{transform_indices = @transform_0, window_bounds = array<i64: 32, 128>}, {pipeline_mode = #tpu.pipeline_mode<synchronous>, transform_indices = @transform_1, window_bounds = array<i64: 128, 128>}, {pipeline_mode = #tpu.pipeline_mode<synchronous>, transform_indices = @transform_2, window_bounds = array<i64: 128, 128>}, {transform_indices = @transform_3, window_bounds = array<i64: 32, 128>}]} {
    %c0 = arith.constant 0 : index
    %c0_0 = arith.constant 0 : index
    %0 = vector.load %arg1[%c0, %c0_0] : memref<32x128xf32, #tpu.memory_space<vmem>>, vector<32x128xf32>
    %c0_1 = arith.constant 0 : index
    %c0_2 = arith.constant 0 : index
    %1 = vector.load %arg2[%c0_1, %c0_2] : memref<128x128xf32, #tpu.memory_space<vmem>>, vector<128x128xf32>
    %cst = arith.constant dense<0.000000e+00> : vector<32x128xf32>
    %2 = tpu.matmul %0, %1, %cst {dimension_numbers = #tpu.dot_dimension_numbers<[1], [1], [0], [0], [0, 0, 1, 0], [], []>} : vector<32x128xf32>, vector<128x128xf32>, vector<32x128xf32> -> vector<32x128xf32>
    %cst_3 = arith.constant 5.000000e-01 : f32
    %3 = vector.broadcast %cst_3 : f32 to vector<32x128xf32>
    %4 = arith.mulf %3, %2 : vector<32x128xf32>
    %cst_4 = arith.constant 4.471500e-02 : f32
    %5 = vector.broadcast %cst_4 : f32 to vector<32x128xf32>
    %6 = arith.mulf %5, %2 : vector<32x128xf32>
    %7 = arith.mulf %6, %2 : vector<32x128xf32>
    %8 = arith.mulf %7, %2 : vector<32x128xf32>
    %9 = arith.addf %2, %8 : vector<32x128xf32>
    %cst_5 = arith.constant 0.797884583 : f32
    %10 = vector.broadcast %cst_5 : f32 to vector<32x128xf32>
    %11 = arith.mulf %10, %9 : vector<32x128xf32>
    %12 = math.tanh %11 : vector<32x128xf32>
    %cst_6 = arith.constant 1.000000e+00 : f32
    %13 = vector.broadcast %cst_6 : f32 to vector<32x128xf32>
    %14 = arith.addf %13, %12 : vector<32x128xf32>
    %15 = arith.mulf %4, %14 : vector<32x128xf32>
    %c0_7 = arith.constant 0 : index
    %c0_8 = arith.constant 0 : index
    %16 = vector.load %arg3[%c0_7, %c0_8] : memref<128x128xf32, #tpu.memory_space<vmem>>, vector<128x128xf32>
    %cst_9 = arith.constant dense<0.000000e+00> : vector<32x128xf32>
    %17 = tpu.matmul %15, %16, %cst_9 {dimension_numbers = #tpu.dot_dimension_numbers<[1], [1], [0], [0], [0, 0, 1, 0], [], []>} : vector<32x128xf32>, vector<128x128xf32>, vector<32x128xf32> -> vector<32x128xf32>
    %c0_10 = arith.constant 0 : index
    %c0_11 = arith.constant 0 : index
    %18 = vector.load %arg4[%c0_10, %c0_11] : memref<32x128xf32, #tpu.memory_space<vmem>>, vector<32x128xf32>
    tpu.vector_store %arg4[%c0_10, %c0_11], %17 {strides = array<i32>} : memref<32x128xf32, #tpu.memory_space<vmem>>, vector<32x128xf32>,
    return
  }
  func.func @transform_0(%arg0: i32) -> (i32, i32) {
    %c0_i32 = arith.constant 0 : i32
    %c0_i32_0 = arith.constant 0 : i32
    return %arg0, %c0_i32 : i32, i32
  }
  func.func @transform_1(%arg0: i32) -> (i32, i32) {
    %c0_i32 = arith.constant 0 : i32
    %c0_i32_0 = arith.constant 0 : i32
    %c0_i32_1 = arith.constant 0 : i32
    return %c0_i32, %c0_i32_0 : i32, i32
  }
  func.func @transform_2(%arg0: i32) -> (i32, i32) {
    %c0_i32 = arith.constant 0 : i32
    %c0_i32_0 = arith.constant 0 : i32
    %c0_i32_1 = arith.constant 0 : i32
    return %c0_i32, %c0_i32_0 : i32, i32
  }
  func.func @transform_3(%arg0: i32) -> (i32, i32) {
    %c0_i32 = arith.constant 0 : i32
    %c0_i32_0 = arith.constant 0 : i32
    return %arg0, %c0_i32 : i32, i32
  }
}

</mosaic_0001>

<llo_original>
// kernel: positionwise_conv_ff.1
$region0: #{positionwise_conv_ff.1}
  #allocation0 [shape = 'u32[]', space=smem, size = 0x4, offset = 0x4, fixed_abs, tag = 'smem constant byte address 0x4 - core index']
  #allocation1 [shape = 'u32[72,128]{1,0:T(1,128)}', space=vmem, size = 0x9000, scoped, tag = 'internal scratch']
  %s0 = inlined_call_operand.vmem [shape: f32[32,128], index: 0, kind: input, shape index: {}]
  %s1 = inlined_call_operand.vmem [shape: f32[128,128], index: 1, kind: input, shape index: {}]
  %s2 = inlined_call_operand.vmem [shape: f32[128,128], index: 2, kind: input, shape index: {}]
  %s3 = inlined_call_operand.hbm [shape: f32[32,128], index: 3, kind: output, shape index: {}]
  %s4 = sld [smem:[#allocation0]]
  $region22: #{positionwise_conv_ff.1} parent=0
    _
  %s6 = ssub.s32 1, %s4
  %s7 = scalar_select 0, %s6, %s4
  $region1: #{positionwise_conv_ff.1} parent=0
    #allocation2 [shape = 'u8[16384]{0}', space=vmem, size = 0x4000, scoped, tag = 'output window, operand 0, single buffered']
    #allocation3 [shape = 's32[1]{0}', space=sflag, size = 0x4, scoped, tag = 'scoped memory for positionwise_conv_ff.1']
    %8 = vsyncpa [#allocation3], 0
    // Predicated region
    $region2: #{positionwise_conv_ff.1} parent=1 // pred_check
      _
    $region3: #{positionwise_conv_ff.1} parent=1 // pred_check_branch
      %10 = sbr.rel (0) target = $region5
    $region4: #{positionwise_conv_ff.1} parent=1 // pred_region
      _
    $region5: #{positionwise_conv_ff.1} parent=1 // pred_fallthru
      _
    // Predicated region
    $region6: #{positionwise_conv_ff.1} parent=1 // pred_check
      _
    $region7: #{positionwise_conv_ff.1} parent=1 // pred_check_branch
      %12 = sbr.rel (0) target = $region9
    $region8: #{positionwise_conv_ff.1} parent=1 // pred_region
      _
    $region9: #{positionwise_conv_ff.1} parent=1 // pred_fallthru
      _
    // Predicated region
    $region10: #{positionwise_conv_ff.1} parent=1 // pred_check
      _
    $region11: #{positionwise_conv_ff.1} parent=1 // pred_check_branch
      %14 = sbr.rel (0) target = $region13
    $region12: #{positionwise_conv_ff.1} parent=1 // pred_region
      _
    $region13: #{positionwise_conv_ff.1} parent=1 // pred_fallthru
      _
    %v15 = vld [vmem:[%s0] sm:$0xff]
    %v16 = vld [vmem:[%s0 + $0x8] sm:$0xff]
    %v17 = vld [vmem:[%s0 + $0x10] sm:$0xff]
    %v18 = vld [vmem:[%s0 + $0x18] sm:$0xff]
    %v19 = vld [vmem:[%s1] sm:$0xff]
    %v20 = vld [vmem:[%s1 + $0x8] sm:$0xff]
    %v21 = vld [vmem:[%s1 + $0x10] sm:$0xff]
    %v22 = vld [vmem:[%s1 + $0x18] sm:$0xff]
    %v23 = vld [vmem:[%s1 + $0x20] sm:$0xff]
    %v24 = vld [vmem:[%s1 + $0x28] sm:$0xff]
    %v25 = vld [vmem:[%s1 + $0x30] sm:$0xff]
    %v26 = vld [vmem:[%s1 + $0x38] sm:$0xff]
    %v27 = vld [vmem:[%s1 + $0x40] sm:$0xff]
    %v28 = vld [vmem:[%s1 + $0x48] sm:$0xff]
    %v29 = vld [vmem:[%s1 + $0x50] sm:$0xff]
    %v30 = vld [vmem:[%s1 + $0x58] sm:$0xff]
    %v31 = vld [vmem:[%s1 + $0x60] sm:$0xff]
    %v32 = vld [vmem:[%s1 + $0x68] sm:$0xff]
    %v33 = vld [vmem:[%s1 + $0x70] sm:$0xff]
    %v34 = vld [vmem:[%s1 + $0x78] sm:$0xff]
    %35 = vmatpush.xpose.msra.mxu0 %v34
    %36 = vmatpush.xpose.msra.mxu0 %v33
    %37 = vmatpush.xpose.msra.mxu0 %v32
    %38 = vmatpush.xpose.msra.mxu0 %v31
    %39 = vmatpush.xpose.msra.mxu0 %v30
    %40 = vmatpush.xpose.msra.mxu0 %v29
    %41 = vmatpush.xpose.msra.mxu0 %v28
    %42 = vmatpush.xpose.msra.mxu0 %v27
    %43 = vmatpush.xpose.msra.mxu0 %v26
    %44 = vmatpush.xpose.msra.mxu0 %v25
    %45 = vmatpush.xpose.msra.mxu0 %v24
    %46 = vmatpush.xpose.msra.mxu0 %v23
    %47 = vmatpush.xpose.msra.mxu0 %v22
    %48 = vmatpush.xpose.msra.mxu0 %v21
    %49 = vmatpush.xpose.msra.mxu0 %v20
    %50 = vmatpush.xpose.msra.mxu0 %v19
    %51 = vmatmul.f32.gmra.mxu0 %v15
    %v52 = vpop.f32.mrf.mxu0
    %v53 = vadd.f32 0.0, %v52
    %54 = vmatmul.f32.gmra.mxu0 %v16
    %v55 = vpop.f32.mrf.mxu0
    %v56 = vadd.f32 0.0, %v55
    %57 = vmatmul.f32.gmra.mxu0 %v17
    %v58 = vpop.f32.mrf.mxu0
    %v59 = vadd.f32 0.0, %v58
    %60 = vmatmul.f32.gmra.mxu0 %v18
    %v61 = vpop.f32.mrf.mxu0
    %v62 = vadd.f32 0.0, %v61
    %63 = vdwg.mxu0
    %v64 = vmul.f32 %v53, 0.5
    %v65 = vmul.f32 %v56, 0.5
    %v66 = vmul.f32 %v59, 0.5
    %v67 = vmul.f32 %v62, 0.5
    %v68 = vmul.f32 %v53, 0.044715
    %v69 = vmul.f32 %v56, 0.044715
    %v70 = vmul.f32 %v59, 0.044715
    %v71 = vmul.f32 %v62, 0.044715
    %v72 = vmul.f32 %v68, %v53
    %v73 = vmul.f32 %v69, %v56
    %v74 = vmul.f32 %v70, %v59
    %v75 = vmul.f32 %v71, %v62
    %v76 = vmul.f32 %v72, %v53
    %v77 = vmul.f32 %v73, %v56
    %v78 = vmul.f32 %v74, %v59
    %v79 = vmul.f32 %v75, %v62
    %v80 = vadd.f32 %v53, %v76
    %v81 = vadd.f32 %v56, %v77
    %v82 = vadd.f32 %v59, %v78
    %v83 = vadd.f32 %v62, %v79
    %v84 = vmul.f32 %v80, 0.7978846
    %v85 = vmul.f32 %v81, 0.7978846
    %v86 = vmul.f32 %v82, 0.7978846
    %v87 = vmul.f32 %v83, 0.7978846
    %v88 = vtanh.pop %v84
    %v89 = vtanh.pop %v85
    %v90 = vtanh.pop %v86
    %v91 = vtanh.pop %v87
    %v92 = vadd.f32 %v88, 1.0
    %v93 = vadd.f32 %v89, 1.0
    %v94 = vadd.f32 %v90, 1.0
    %v95 = vadd.f32 %v91, 1.0
    %v96 = vmul.f32 %v64, %v92
    %v97 = vmul.f32 %v65, %v93
    %v98 = vmul.f32 %v66, %v94
    %v99 = vmul.f32 %v67, %v95
    %v100 = vld [vmem:[%s2] sm:$0xff]
    %v101 = vld [vmem:[%s2 + $0x8] sm:$0xff]
    %v102 = vld [vmem:[%s2 + $0x10] sm:$0xff]
    %v103 = vld [vmem:[%s2 + $0x18] sm:$0xff]
    %v104 = vld [vmem:[%s2 + $0x20] sm:$0xff]
    %v105 = vld [vmem:[%s2 + $0x28] sm:$0xff]
    %v106 = vld [vmem:[%s2 + $0x30] sm:$0xff]
    %v107 = vld [vmem:[%s2 + $0x38] sm:$0xff]
    %v108 = vld [vmem:[%s2 + $0x40] sm:$0xff]
    %v109 = vld [vmem:[%s2 + $0x48] sm:$0xff]
    %v110 = vld [vmem:[%s2 + $0x50] sm:$0xff]
    %v111 = vld [vmem:[%s2 + $0x58] sm:$0xff]
    %v112 = vld [vmem:[%s2 + $0x60] sm:$0xff]
    %v113 = vld [vmem:[%s2 + $0x68] sm:$0xff]
    %v114 = vld [vmem:[%s2 + $0x70] sm:$0xff]
    %v115 = vld [vmem:[%s2 + $0x78] sm:$0xff]
    %116 = vmatpush.xpose.msra.mxu0 %v115
    %117 = vmatpush.xpose.msra.mxu0 %v114
    %118 = vmatpush.xpose.msra.mxu0 %v113
    %119 = vmatpush.xpose.msra.mxu0 %v112
    %120 = vmatpush.xpose.msra.mxu0 %v111
    %121 = vmatpush.xpose.msra.mxu0 %v110
    %122 = vmatpush.xpose.msra.mxu0 %v109
    %123 = vmatpush.xpose.msra.mxu0 %v108
    %124 = vmatpush.xpose.msra.mxu0 %v107
    %125 = vmatpush.xpose.msra.mxu0 %v106
    %126 = vmatpush.xpose.msra.mxu0 %v105
    %127 = vmatpush.xpose.msra.mxu0 %v104
    %128 = vmatpush.xpose.msra.mxu0 %v103
    %129 = vmatpush.xpose.msra.mxu0 %v102
    %130 = vmatpush.xpose.msra.mxu0 %v101
    %131 = vmatpush.xpose.msra.mxu0 %v100
    %132 = vmatmul.f32.gmra.mxu0 %v96
    %v133 = vpop.f32.mrf.mxu0
    %v134 = vadd.f32 0.0, %v133
    %135 = vmatmul.f32.gmra.mxu0 %v97
    %v136 = vpop.f32.mrf.mxu0
    %v137 = vadd.f32 0.0, %v136
    %138 = vmatmul.f32.gmra.mxu0 %v98
    %v139 = vpop.f32.mrf.mxu0
    %v140 = vadd.f32 0.0, %v139
    %141 = vmatmul.f32.gmra.mxu0 %v99
    %v142 = vpop.f32.mrf.mxu0
    %v143 = vadd.f32 0.0, %v142
    %144 = vdwg.mxu0
    %145 = vst [vmem:[#allocation2] sm:$0xff] %v134
    %146 = vst [vmem:[#allocation2 + $0x8] sm:$0xff] %v137
    %147 = vst [vmem:[#allocation2 + $0x10] sm:$0xff] %v140
    %148 = vst [vmem:[#allocation2 + $0x18] sm:$0xff] %v143
    // Predicated region
    $region14: #{positionwise_conv_ff.1} parent=1 // pred_check
      _
    $region15: #{positionwise_conv_ff.1} parent=1 // pred_check_branch
      %150 = sbr.rel (0) target = $region17
    $region16: #{positionwise_conv_ff.1} parent=1 // pred_region
      %152 = vsyncadd [#allocation3], 0
      %s153 = sshll.u32 [#allocation2], 4
      %s154 = int_to_ptr.vmem [resolvable:$true] %s153
      %s155 = sshll.u32 %s3, 4
      %s156 = int_to_ptr.hbm [resolvable:$true] %s155
      %161 = dma.vmem_to_hbm [thread:$0]  %s154, 512, %s156, [#allocation3], 128, 128, 8
    $region17: #{positionwise_conv_ff.1} parent=1 // pred_fallthru
      _
    // Predicated region
    $region18: #{positionwise_conv_ff.1} parent=1 // pred_check
      _
    $region19: #{positionwise_conv_ff.1} parent=1 // pred_check_branch
      %163 = sbr.rel (0) target = $region21
    $region20: #{positionwise_conv_ff.1} parent=1 // pred_region
      %165 = dma.done [#allocation3], 512
    $region21: #{positionwise_conv_ff.1} parent=1 // pred_fallthru
      _
    %166 = vsyncpa [#allocation3], 1

</llo_original>
